<compile_context>
chip_gen: v7x
topology: tpu7x:2x2x1
jax: 0.10.0
libtpu: 0.0.40
codegen_flags: <defaults>
</compile_context>

<pallas_src>
import functools

import jax
import jax.numpy as jnp
from jax import lax
from jax.experimental import pallas as pl
from jax.experimental.pallas import tpu as pltpu


# --------------------------------------------------------------------------
# Hardware / tiling helpers
# --------------------------------------------------------------------------
def _chip_params():
    """Returns (scoped VMEM request, physical VMEM capacity, small-VMEM chip?)."""
    try:
        cap = int(pltpu.get_tpu_info().vmem_capacity_bytes)
    except Exception:          # interpret mode / older runtimes
        cap = 64 << 20         # conservative (v7x-sized) assumption
    limit = min(64 << 20, (cap * 3) // 4)   # 64 MiB on v5e/v6e, 48 MiB on v7x
    small_vmem = cap <= (96 << 20)          # v7x: 64 MiB VMEM, 2 TCs / chip
    return limit, cap, small_vmem


def _pick_tile(dim, target, bases=(256, 128)):
    """Largest multiple of one of `bases` that divides `dim` and is <= target.
    Returns the full dim when dim <= target or when no such divisor exists."""
    if dim <= target:
        return dim
    for base in bases:
        t = (target // base) * base
        while t >= base:
            if dim % t == 0:
                return t
            t -= base
    return dim


# --------------------------------------------------------------------------
# Standardization ("standardize once").  Z is written to HBM as bf16 with the
# 1/sqrt(N) factor folded in so that C = Z1^T Z2 directly.  Zero-variance
# columns (including zero-padded ones) map to z = 0 instead of NaN.
# --------------------------------------------------------------------------
def _standardize_onepass_kernel(v1_ref, v2_ref, z1_ref, z2_ref, *, n):
    inv_sqrt_n = 1.0 / (float(n) ** 0.5)
    inv_nm1 = 1.0 / float(max(n - 1, 1))
    for v_ref, z_ref in ((v1_ref, z1_ref), (v2_ref, z2_ref)):
        v = v_ref[...].astype(jnp.float32)              # (N, T)
        mean = jnp.mean(v, axis=0, keepdims=True)
        c = v - mean
        var = jnp.sum(c * c, axis=0, keepdims=True) * inv_nm1
        scale = jnp.where(var > 0.0, lax.rsqrt(var), 0.0) * inv_sqrt_n
        z_ref[...] = (c * scale).astype(z_ref.dtype)


def _col_moments_kernel(v1_ref, v2_ref, m1_ref, s1_ref, m2_ref, s2_ref,
                        sum1, sq1, sum2, sq2, *, n):
    kb = pl.program_id(1)
    nkb = pl.num_programs(1)

    @pl.when(kb == 0)
    def _():
        for acc in (sum1, sq1, sum2, sq2):
            acc[...] = jnp.zeros_like(acc)

    v1 = v1_ref[...].astype(jnp.float32)
    v2 = v2_ref[...].astype(jnp.float32)
    sum1[...] += jnp.sum(v1, axis=0, keepdims=True)
    sq1[...] += jnp.sum(v1 * v1, axis=0, keepdims=True)
    sum2[...] += jnp.sum(v2, axis=0, keepdims=True)
    sq2[...] += jnp.sum(v2 * v2, axis=0, keepdims=True)

    @pl.when(kb == nkb - 1)
    def _():
        inv_n = 1.0 / float(n)
        inv_nm1 = 1.0 / float(max(n - 1, 1))
        inv_sqrt_n = 1.0 / (float(n) ** 0.5)
        for s_acc, q_acc, m_ref, sc_ref in ((sum1, sq1, m1_ref, s1_ref),
                                            (sum2, sq2, m2_ref, s2_ref)):
            mean = s_acc[...] * inv_n
            # NOTE: sum/sum-sq variance loses precision when |mean| >> std;
            # this path only triggers for very large batches.
            var = jnp.maximum((q_acc[...] - s_acc[...] * mean) * inv_nm1, 0.0)
            m_ref[...] = mean
            sc_ref[...] = jnp.where(var > 0.0, lax.rsqrt(var), 0.0) * inv_sqrt_n


def _apply_standardize_kernel(v1_ref, v2_ref, m1_ref, s1_ref, m2_ref, s2_ref,
                              z1_ref, z2_ref):
    z1_ref[...] = ((v1_ref[...].astype(jnp.float32) - m1_ref[...])
                   * s1_ref[...]).astype(z1_ref.dtype)
    z2_ref[...] = ((v2_ref[...].astype(jnp.float32) - m2_ref[...])
                   * s2_ref[...]).astype(z2_ref.dtype)


def _standardize_views(view1, view2, budget):
    n, d_pad = view1.shape
    z_shape = [jax.ShapeDtypeStruct((n, d_pad), jnp.bfloat16)] * 2

    # Fused one-pass standardization whenever a full-batch column block
    # (2 views, f32 in + bf16 out, double-buffered) fits in ~half the budget.
    per_col_bytes = n * 24
    t_cap = ((budget // 2) // per_col_bytes // 128) * 128
    if t_cap >= 128:
        t = _pick_tile(d_pad, min(t_cap, 2048), (256, 128))
        return pl.pallas_call(
            functools.partial(_standardize_onepass_kernel, n=n),
            out_shape=z_shape,
            grid=(d_pad // t,),
            in_specs=[pl.BlockSpec((n, t), lambda j: (0, j))] * 2,
            out_specs=[pl.BlockSpec((n, t), lambda j: (0, j))] * 2,
            compiler_params=pltpu.CompilerParams(
                dimension_semantics=("parallel",), vmem_limit_bytes=budget),
        )(view1, view2)

    # Very large batch: two streaming passes with batch tiling.
    t = _pick_tile(d_pad, 512, (256, 128))
    bk = _pick_tile(n, 2048, (256, 128, 16, 8))
    m1, s1, m2, s2 = pl.pallas_call(
        functools.partial(_col_moments_kernel, n=n),
        out_shape=[jax.ShapeDtypeStruct((1, d_pad), jnp.float32)] * 4,
        grid=(d_pad // t, n // bk),
        in_specs=[pl.BlockSpec((bk, t), lambda j, k: (k, j))] * 2,
        out_specs=[pl.BlockSpec((1, t), lambda j, k: (0, j))] * 4,
        scratch_shapes=[pltpu.VMEM((1, t), jnp.float32) for _ in range(4)],
        compiler_params=pltpu.CompilerParams(
            dimension_semantics=("parallel", "arbitrary"),
            vmem_limit_bytes=budget),
    )(view1, view2)
    return pl.pallas_call(
        _apply_standardize_kernel,
        out_shape=z_shape,
        grid=(n // bk, d_pad // t),
        in_specs=[pl.BlockSpec((bk, t), lambda k, j: (k, j)),
                  pl.BlockSpec((bk, t), lambda k, j: (k, j)),
                  pl.BlockSpec((1, t), lambda k, j: (0, j)),
                  pl.BlockSpec((1, t), lambda k, j: (0, j)),
                  pl.BlockSpec((1, t), lambda k, j: (0, j)),
                  pl.BlockSpec((1, t), lambda k, j: (0, j))],
        out_specs=[pl.BlockSpec((bk, t), lambda k, j: (k, j))] * 2,
        compiler_params=pltpu.CompilerParams(
            dimension_semantics=("parallel", "parallel"),
            vmem_limit_bytes=budget),
    )(view1, view2, m1, s1, m2, s2)


# --------------------------------------------------------------------------
# Path A: tiled d x d correlation on pre-standardized bf16 Z (N >= d).
# --------------------------------------------------------------------------
def _corr_kernel(z1_ref, z2_ref, out_ref, corr_acc, diag_acc, *, alpha, d):
    di = pl.program_id(0)
    dj = pl.program_id(1)
    k = pl.program_id(2)
    nk = pl.num_programs(2)

    @pl.when((dj == 0) & (k == 0))
    def _():
        out_ref[...] = jnp.zeros_like(out_ref)

    @pl.when(k == 0)
    def _():
        corr_acc[...] = jnp.zeros_like(corr_acc)
        diag_acc[...] = jnp.zeros_like(diag_acc)

    z1 = z1_ref[...]                                     # bf16 (k_tile, d_tile)
    z2 = z2_ref[...]

    # bf16 operands straight into the MXU, f32 accumulation (1/N is folded
    # into Z, so corr_acc holds c directly).
    corr_acc[...] += lax.dot_general(
        z1, z2, dimension_numbers=(((0,), (0,)), ((), ())),
        preferred_element_type=jnp.float32)

    # Diagonal entries only live in di == dj tiles; accumulate elementwise.
    @pl.when(di == dj)
    def _():
        diag_acc[...] += jnp.sum(
            z1.astype(jnp.float32) * z2.astype(jnp.float32),
            axis=0, keepdims=True)

    @pl.when(k == nk - 1)
    def _():
        c = corr_acc[...]
        out_ref[...] = out_ref[...] + (alpha / d) * jnp.sum(c * c)

    @pl.when((k == nk - 1) & (di == dj))
    def _():
        dg = diag_acc[...]
        out_ref[...] = out_ref[...] + (jnp.sum((dg - 1.0) ** 2)
                                       - (alpha / d) * jnp.sum(dg * dg))


def _barlow_loss_corr(view1, view2, alpha, d_true):
    n, d_pad = view1.shape
    budget, _, small_vmem = _chip_params()

    # Stage 1: standardize once -> bf16 Z with 1/sqrt(N) folded in.
    z1, z2 = _standardize_views(view1, view2, budget)

    # Stage 2: tiled d x d correlation.  d_tile drives arithmetic intensity
    # (~d_tile/2 flops/byte with bf16 inputs): 2048 on 128-MiB-VMEM chips
    # (v5e/v6e), 1024 on v7x (64 MiB VMEM; 3.2 TB/s HBM -> already MXU-bound).
    d_target = 1024 if small_vmem else 2048
    d_tile = _pick_tile(d_pad, d_target, (256, 128))
    k_tile = _pick_tile(n, 1024, (256, 128, 16, 8))
    # Keep double-buffered bf16 input blocks within ~half the budget even when
    # k_tile fell back to an indivisible full batch.
    while d_tile % 256 == 0 and 8 * k_tile * d_tile > budget // 2:
        d_tile //= 2
    nd = d_pad // d_tile
    nk = n // k_tile

    # Note (v5e): if the dj-operand DMA is still exposed after the bf16/tile
    # changes, pipeline_mode=pl.Buffered(3) on in_specs[1] hides it.
    out = pl.pallas_call(
        functools.partial(_corr_kernel, alpha=float(alpha), d=float(d_true)),
        out_shape=jax.ShapeDtypeStruct((nd, 8, 128), jnp.float32),
        grid=(nd, nd, nk),
        in_specs=[
            pl.BlockSpec((k_tile, d_tile), lambda di, dj, k: (k, di)),
            pl.BlockSpec((k_tile, d_tile), lambda di, dj, k: (k, dj)),
        ],
        out_specs=pl.BlockSpec((1, 8, 128), lambda di, dj, k: (di, 0, 0)),
        scratch_shapes=[pltpu.VMEM((d_tile, d_tile), jnp.float32),
                        pltpu.VMEM((1, d_tile), jnp.float32)],
        compiler_params=pltpu.CompilerParams(
            dimension_semantics=("parallel", "arbitrary", "arbitrary"),
            vmem_limit_bytes=budget),
    )(z1, z2)
    return jnp.sum(out[:, 0, 0])


# --------------------------------------------------------------------------
# Path B: Gram reformulation (N < d).  Row-split "parallel" axis lets v7x's
# two TensorCores each accumulate an (N/2, N) slab of both Grams.
# --------------------------------------------------------------------------
def _gram_kernel(v1_ref, v2_ref, out_ref, g1_acc, g2_acc, on_acc, dsq_acc,
                 *, alpha, n, d, row_tile):
    r = pl.program_id(0)
    kd = pl.program_id(1)
    nkd = pl.num_programs(1)

    @pl.when(kd == 0)
    def _():
        g1_acc[...] = jnp.zeros_like(g1_acc)
        g2_acc[...] = jnp.zeros_like(g2_acc)
        on_acc[...] = jnp.zeros_like(on_acc)
        dsq_acc[...] = jnp.zeros_like(dsq_acc)

    inv_sqrt_n = 1.0 / (float(n) ** 0.5)
    inv_nm1 = 1.0 / float(max(n - 1, 1))

    v1 = v1_ref[...].astype(jnp.float32)                 # (N, D_TILE)
    v2 = v2_ref[...].astype(jnp.float32)
    mean1 = jnp.mean(v1, axis=0, keepdims=True)
    mean2 = jnp.mean(v2, axis=0, keepdims=True)
    c1 = v1 - mean1
    c2 = v2 - mean2
    var1 = jnp.sum(c1 * c1, axis=0, keepdims=True) * inv_nm1
    var2 = jnp.sum(c2 * c2, axis=0, keepdims=True) * inv_nm1
    s1 = jnp.where(var1 > 0.0, lax.rsqrt(var1), 0.0) * inv_sqrt_n
    s2 = jnp.where(var2 > 0.0, lax.rsqrt(var2), 0.0) * inv_sqrt_n
    z1 = c1 * s1
    z2 = c2 * s2
    z1h = z1.astype(jnp.bfloat16)
    z2h = z2.astype(jnp.bfloat16)

    # Row slab for this core (restandardize the slab with the full-column
    # stats; avoids a dynamic slice of a value).
    if row_tile == n:
        z1s, z2s = z1h, z2h
    else:
        start = pl.multiple_of(r * row_tile, 8)
        v1s = v1_ref[pl.ds(start, row_tile), :].astype(jnp.float32)
        v2s = v2_ref[pl.ds(start, row_tile), :].astype(jnp.float32)
        z1s = ((v1s - mean1) * s1).astype(jnp.bfloat16)
        z2s = ((v2s - mean2) * s2).astype(jnp.bfloat16)

    # G1 += Z1[rows] Z1^T, G2 += Z2[rows] Z2^T (contract this d-tile), bf16
    # operands, f32 accumulation on the MXU.
    g1_acc[...] += lax.dot_general(
        z1s, z1h, dimension_numbers=(((1,), (1,)), ((), ())),
        preferred_element_type=jnp.float32)
    g2_acc[...] += lax.dot_general(
        z2s, z2h, dimension_numbers=(((1,), (1,)), ((), ())),
        preferred_element_type=jnp.float32)

    # diag(c) for this tile's columns, full batch, f32, only on row block 0.
    @pl.when(r == 0)
    def _():
        diag = jnp.sum(z1 * z2, axis=0, keepdims=True)
        on_acc[...] += (diag - 1.0) ** 2
        dsq_acc[...] += diag * diag

    @pl.when(kd == nkd - 1)
    def _():
        fro_r = jnp.sum(g1_acc[...] * g2_acc[...])
        out_ref[...] = jnp.zeros_like(out_ref) + (alpha / d) * fro_r

    @pl.when((kd == nkd - 1) & (r == 0))
    def _():
        out_ref[...] = out_ref[...] + (jnp.sum(on_acc[...])
                                       - (alpha / d) * jnp.sum(dsq_acc[...]))


def _barlow_loss_gram(view1, view2, alpha, d_true):
    n, d_pad = view1.shape
    budget, _, small_vmem = _chip_params()

    # v7x megacore: split the Gram row dimension across the two TensorCores.
    # Single-core chips keep one row block (avoids re-reading the views).
    n_row = 2 if (small_vmem and n >= 128 and n % 16 == 0) else 1
    row_tile = n // n_row

    scratch_bytes = 2 * row_tile * n * 4
    avail = budget - scratch_bytes - (4 << 20)
    t_cap = 128
    if avail > 0:
        t_cap = max(128, min(2048, (avail // (16 * n) // 128) * 128))
    d_tile = _pick_tile(d_pad, t_cap, (256, 128))
    nd = d_pad // d_tile

    out = pl.pallas_call(
        functools.partial(_gram_kernel, alpha=float(alpha), n=n,
                          d=float(d_true), row_tile=row_tile),
        out_shape=jax.ShapeDtypeStruct((n_row, 8, 128), jnp.float32),
        grid=(n_row, nd),
        in_specs=[pl.BlockSpec((n, d_tile), lambda r, kd: (0, kd))] * 2,
        out_specs=pl.BlockSpec((1, 8, 128), lambda r, kd: (r, 0, 0)),
        scratch_shapes=[pltpu.VMEM((row_tile, n), jnp.float32),
                        pltpu.VMEM((row_tile, n), jnp.float32),
                        pltpu.VMEM((1, d_tile), jnp.float32),
                        pltpu.VMEM((1, d_tile), jnp.float32)],
        compiler_params=pltpu.CompilerParams(
            dimension_semantics=("parallel", "arbitrary"),
            vmem_limit_bytes=budget),
    )(view1, view2)
    return jnp.sum(out[:, 0, 0])


# --------------------------------------------------------------------------
# Public entry point (matches BarlowLoss.forward semantics).
# --------------------------------------------------------------------------
def barlow_loss(view1, view2, alpha: float = 0.0005):
    """Pallas TPU implementation of BarlowLoss.forward.  Returns a scalar."""
    assert view1.shape == view2.shape and view1.ndim == 2
    n, d = view1.shape

    # Pad the projection dim to a lane multiple (128).  Padded (zero-variance)
    # columns standardize to z = 0 -> diag(c) = 0 there, contributing exactly
    # (0 - 1)^2 = 1 each to the on-diagonal sum and nothing elsewhere.
    d_pad = ((d + 127) // 128) * 128
    pad_cols = d_pad - d
    if pad_cols:
        view1 = jnp.pad(view1, ((0, 0), (0, pad_cols)))
        view2 = jnp.pad(view2, ((0, 0), (0, pad_cols)))

    if n < d and n <= 2048:
        raw = _barlow_loss_gram(view1, view2, alpha, d)
    else:
        raw = _barlow_loss_corr(view1, view2, alpha, d)
    return raw - float(pad_cols)


def _barlow_loss_ref(view1, view2, alpha: float = 0.0005):
    """Pure-JAX reference mirroring the PyTorch module exactly."""
    n, d = view1.shape
    z1 = (view1 - view1.mean(0)) / view1.std(0, ddof=1)
    z2 = (view2 - view2.mean(0)) / view2.std(0, ddof=1)
    c = (z1.T @ z2) / n
    on_diag = jnp.sum((jnp.diagonal(c) - 1.0) ** 2)
    off_diag = jnp.sum(c ** 2) - jnp.sum(jnp.diagonal(c) ** 2)
    return on_diag + alpha * off_diag / d


if __name__ == "__main__":
    key = jax.random.PRNGKey(0)
    # (N, d): Gram path, corr path, corr path w/ lane padding, Gram w/ padding.
    cases = [(8, 128), (256, 128), (136, 96), (32, 96)]
    for idx, (n, d) in enumerate(cases):
        k1, k2 = jax.random.split(jax.random.fold_in(key, idx))
        v1 = jax.random.normal(k1, (n, d), dtype=jnp.float32)
        v2 = 0.5 * v1 + jax.random.normal(k2, (n, d), dtype=jnp.float32)
        loss = jax.block_until_ready(barlow_loss(v1, v2))
        ref = jax.block_until_ready(_barlow_loss_ref(v1, v2))
        # bf16 MXU operands -> slightly relaxed tolerance vs the f32 reference.
        assert jnp.allclose(loss, ref, rtol=5e-3, atol=5e-3), (n, d, loss, ref)
    print("KERNEL_OK")
</pallas_src>

<mosaic_0001>
module attributes {stable_mosaic.version = 11 : i64} {
  func.func @_gram_kernel(%arg0: i32, %arg1: i32, %arg2: memref<8x128xf32, #tpu.memory_space<vmem>>, %arg3: memref<8x128xf32, #tpu.memory_space<vmem>>, %arg4: memref<1x8x128xf32, #tpu.memory_space<vmem>>, %arg5: memref<8x8xf32, #tpu.memory_space<vmem>>, %arg6: memref<8x8xf32, #tpu.memory_space<vmem>>, %arg7: memref<1x128xf32, #tpu.memory_space<vmem>>, %arg8: memref<1x128xf32, #tpu.memory_space<vmem>>) attributes {dimension_semantics = [#tpu.dimension_semantics<parallel>, #tpu.dimension_semantics<arbitrary>], iteration_bounds = array<i64: 1, 1>, scalar_prefetch = 0 : i64, scratch_operands = 4 : i64, tpu.core_type = #tpu.core_type<tc>, window_params = [{transform_indices = @transform_0, window_bounds = array<i64: 8, 128>}, {transform_indices = @transform_1, window_bounds = array<i64: 8, 128>}, {transform_indices = @transform_2, window_bounds = array<i64: 1, 8, 128>}]} {
    %c0_i32 = arith.constant 0 : i32
    %0 = arith.cmpi eq, %arg1, %c0_i32 : i32
    %1 = arith.extui %0 : i1 to i32
    %c0_i32_0 = arith.constant 0 : i32
    %2 = arith.cmpi ne, %1, %c0_i32_0 : i32
    scf.if %2 {
      %cst_34 = arith.constant 0.000000e+00 : f32
      %66 = vector.broadcast %cst_34 : f32 to vector<8x8xf32>
      %c0_35 = arith.constant 0 : index
      %c0_36 = arith.constant 0 : index
      %67 = vector.load %arg5[%c0_35, %c0_36] : memref<8x8xf32, #tpu.memory_space<vmem>>, vector<8x8xf32>
      tpu.vector_store %arg5[%c0_35, %c0_36], %66 {strides = array<i32>} : memref<8x8xf32, #tpu.memory_space<vmem>>, vector<8x8xf32>,
      %cst_37 = arith.constant 0.000000e+00 : f32
      %68 = vector.broadcast %cst_37 : f32 to vector<8x8xf32>
      %c0_38 = arith.constant 0 : index
      %c0_39 = arith.constant 0 : index
      %69 = vector.load %arg6[%c0_38, %c0_39] : memref<8x8xf32, #tpu.memory_space<vmem>>, vector<8x8xf32>
      tpu.vector_store %arg6[%c0_38, %c0_39], %68 {strides = array<i32>} : memref<8x8xf32, #tpu.memory_space<vmem>>, vector<8x8xf32>,
      %cst_40 = arith.constant 0.000000e+00 : f32
      %70 = vector.broadcast %cst_40 : f32 to vector<1x128xf32>
      %c0_41 = arith.constant 0 : index
      %c0_42 = arith.constant 0 : index
      %71 = vector.load %arg7[%c0_41, %c0_42] : memref<1x128xf32, #tpu.memory_space<vmem>>, vector<1x128xf32>
      tpu.vector_store %arg7[%c0_41, %c0_42], %70 {strides = array<i32>} : memref<1x128xf32, #tpu.memory_space<vmem>>, vector<1x128xf32>,
      %cst_43 = arith.constant 0.000000e+00 : f32
      %72 = vector.broadcast %cst_43 : f32 to vector<1x128xf32>
      %c0_44 = arith.constant 0 : index
      %c0_45 = arith.constant 0 : index
      %73 = vector.load %arg8[%c0_44, %c0_45] : memref<1x128xf32, #tpu.memory_space<vmem>>, vector<1x128xf32>
      tpu.vector_store %arg8[%c0_44, %c0_45], %72 {strides = array<i32>} : memref<1x128xf32, #tpu.memory_space<vmem>>, vector<1x128xf32>,
    } else {
    }
    %c0 = arith.constant 0 : index
    %c0_1 = arith.constant 0 : index
    %3 = vector.load %arg2[%c0, %c0_1] : memref<8x128xf32, #tpu.memory_space<vmem>>, vector<8x128xf32>
    %c0_2 = arith.constant 0 : index
    %c0_3 = arith.constant 0 : index
    %4 = vector.load %arg3[%c0_2, %c0_3] : memref<8x128xf32, #tpu.memory_space<vmem>>, vector<8x128xf32>
    %cst = arith.constant dense<0.000000e+00> : vector<128xf32>
    %5 = vector.multi_reduction <add>, %3, %cst [0] : vector<8x128xf32> to vector<128xf32>
    %6 = vector.shape_cast %5 : vector<128xf32> to vector<1x128xf32>
    %cst_4 = arith.constant 8.000000e+00 : f32
    %7 = vector.broadcast %cst_4 : f32 to vector<1x128xf32>
    %8 = arith.divf %6, %7 : vector<1x128xf32>
    %cst_5 = arith.constant dense<0.000000e+00> : vector<128xf32>
    %9 = vector.multi_reduction <add>, %4, %cst_5 [0] : vector<8x128xf32> to vector<128xf32>
    %10 = vector.shape_cast %9 : vector<128xf32> to vector<1x128xf32>
    %cst_6 = arith.constant 8.000000e+00 : f32
    %11 = vector.broadcast %cst_6 : f32 to vector<1x128xf32>
    %12 = arith.divf %10, %11 : vector<1x128xf32>
    %13 = vector.broadcast %8 : vector<1x128xf32> to vector<8x128xf32>
    %14 = arith.subf %3, %13 : vector<8x128xf32>
    %15 = vector.broadcast %12 : vector<1x128xf32> to vector<8x128xf32>
    %16 = arith.subf %4, %15 : vector<8x128xf32>
    %17 = arith.mulf %14, %14 : vector<8x128xf32>
    %cst_7 = arith.constant dense<0.000000e+00> : vector<128xf32>
    %18 = vector.multi_reduction <add>, %17, %cst_7 [0] : vector<8x128xf32> to vector<128xf32>
    %19 = vector.shape_cast %18 : vector<128xf32> to vector<1x128xf32>
    %cst_8 = arith.constant 0.142857149 : f32
    %20 = vector.broadcast %cst_8 : f32 to vector<1x128xf32>
    %21 = arith.mulf %19, %20 : vector<1x128xf32>
    %22 = arith.mulf %16, %16 : vector<8x128xf32>
    %cst_9 = arith.constant dense<0.000000e+00> : vector<128xf32>
    %23 = vector.multi_reduction <add>, %22, %cst_9 [0] : vector<8x128xf32> to vector<128xf32>
    %24 = vector.shape_cast %23 : vector<128xf32> to vector<1x128xf32>
    %cst_10 = arith.constant 0.142857149 : f32
    %25 = vector.broadcast %cst_10 : f32 to vector<1x128xf32>
    %26 = arith.mulf %24, %25 : vector<1x128xf32>
    %cst_11 = arith.constant 0.000000e+00 : f32
    %27 = vector.broadcast %cst_11 : f32 to vector<1x128xf32>
    %28 = arith.cmpf ogt, %21, %27 : vector<1x128xf32>
    %29 = math.rsqrt %21 : vector<1x128xf32>
    %cst_12 = arith.constant 0.000000e+00 : f32
    %30 = vector.broadcast %cst_12 : f32 to vector<1x128xf32>
    %31 = arith.select %28, %29, %30 : vector<1x128xi1>, vector<1x128xf32>
    %cst_13 = arith.constant 0.353553385 : f32
    %32 = vector.broadcast %cst_13 : f32 to vector<1x128xf32>
    %33 = arith.mulf %31, %32 : vector<1x128xf32>
    %cst_14 = arith.constant 0.000000e+00 : f32
    %34 = vector.broadcast %cst_14 : f32 to vector<1x128xf32>
    %35 = arith.cmpf ogt, %26, %34 : vector<1x128xf32>
    %36 = math.rsqrt %26 : vector<1x128xf32>
    %cst_15 = arith.constant 0.000000e+00 : f32
    %37 = vector.broadcast %cst_15 : f32 to vector<1x128xf32>
    %38 = arith.select %35, %36, %37 : vector<1x128xi1>, vector<1x128xf32>
    %cst_16 = arith.constant 0.353553385 : f32
    %39 = vector.broadcast %cst_16 : f32 to vector<1x128xf32>
    %40 = arith.mulf %38, %39 : vector<1x128xf32>
    %41 = vector.broadcast %33 : vector<1x128xf32> to vector<8x128xf32>
    %42 = arith.mulf %14, %41 : vector<8x128xf32>
    %43 = vector.broadcast %40 : vector<1x128xf32> to vector<8x128xf32>
    %44 = arith.mulf %16, %43 : vector<8x128xf32>
    %45 = arith.truncf %42 : vector<8x128xf32> to vector<8x128xbf16>
    %46 = arith.truncf %44 : vector<8x128xf32> to vector<8x128xbf16>
    %c0_17 = arith.constant 0 : index
    %c0_18 = arith.constant 0 : index
    %47 = vector.load %arg5[%c0_17, %c0_18] : memref<8x8xf32, #tpu.memory_space<vmem>>, vector<8x8xf32>
    %cst_19 = arith.constant dense<0.000000e+00> : vector<8x8xf32>
    %48 = tpu.matmul %45, %45, %cst_19 {dimension_numbers = #tpu.dot_dimension_numbers<[1], [1], [0], [0], [0, 0, 1, 0], [], []>} : vector<8x128xbf16>, vector<8x128xbf16>, vector<8x8xf32> -> vector<8x8xf32>
    %49 = arith.addf %47, %48 : vector<8x8xf32>
    %c0_20 = arith.constant 0 : index
    %c0_21 = arith.constant 0 : index
    %50 = vector.load %arg5[%c0_20, %c0_21] : memref<8x8xf32, #tpu.memory_space<vmem>>, vector<8x8xf32>
    tpu.vector_store %arg5[%c0_20, %c0_21], %49 {strides = array<i32>} : memref<8x8xf32, #tpu.memory_space<vmem>>, vector<8x8xf32>,
    %c0_22 = arith.constant 0 : index
    %c0_23 = arith.constant 0 : index
    %51 = vector.load %arg6[%c0_22, %c0_23] : memref<8x8xf32, #tpu.memory_space<vmem>>, vector<8x8xf32>
    %cst_24 = arith.constant dense<0.000000e+00> : vector<8x8xf32>
    %52 = tpu.matmul %46, %46, %cst_24 {dimension_numbers = #tpu.dot_dimension_numbers<[1], [1], [0], [0], [0, 0, 1, 0], [], []>} : vector<8x128xbf16>, vector<8x128xbf16>, vector<8x8xf32> -> vector<8x8xf32>
    %53 = arith.addf %51, %52 : vector<8x8xf32>
    %c0_25 = arith.constant 0 : index
    %c0_26 = arith.constant 0 : index
    %54 = vector.load %arg6[%c0_25, %c0_26] : memref<8x8xf32, #tpu.memory_space<vmem>>, vector<8x8xf32>
    tpu.vector_store %arg6[%c0_25, %c0_26], %53 {strides = array<i32>} : memref<8x8xf32, #tpu.memory_space<vmem>>, vector<8x8xf32>,
    %c0_i32_27 = arith.constant 0 : i32
    %55 = arith.cmpi eq, %arg0, %c0_i32_27 : i32
    %56 = arith.extui %55 : i1 to i32
    %c0_i32_28 = arith.constant 0 : i32
    %57 = arith.cmpi ne, %56, %c0_i32_28 : i32
    scf.if %57 {
      %66 = arith.mulf %42, %44 : vector<8x128xf32>
      %cst_34 = arith.constant dense<0.000000e+00> : vector<128xf32>
      %67 = vector.multi_reduction <add>, %66, %cst_34 [0] : vector<8x128xf32> to vector<128xf32>
      %68 = vector.shape_cast %67 : vector<128xf32> to vector<1x128xf32>
      %c0_35 = arith.constant 0 : index
      %c0_36 = arith.constant 0 : index
      %69 = vector.load %arg7[%c0_35, %c0_36] : memref<1x128xf32, #tpu.memory_space<vmem>>, vector<1x128xf32>
      %cst_37 = arith.constant 1.000000e+00 : f32
      %70 = vector.broadcast %cst_37 : f32 to vector<1x128xf32>
      %71 = arith.subf %68, %70 : vector<1x128xf32>
      %72 = arith.mulf %71, %71 : vector<1x128xf32>
      %73 = arith.addf %69, %72 : vector<1x128xf32>
      %c0_38 = arith.constant 0 : index
      %c0_39 = arith.constant 0 : index
      %74 = vector.load %arg7[%c0_38, %c0_39] : memref<1x128xf32, #tpu.memory_space<vmem>>, vector<1x128xf32>
      tpu.vector_store %arg7[%c0_38, %c0_39], %73 {strides = array<i32>} : memref<1x128xf32, #tpu.memory_space<vmem>>, vector<1x128xf32>,
      %c0_40 = arith.constant 0 : index
      %c0_41 = arith.constant 0 : index
      %75 = vector.load %arg8[%c0_40, %c0_41] : memref<1x128xf32, #tpu.memory_space<vmem>>, vector<1x128xf32>
      %76 = arith.mulf %68, %68 : vector<1x128xf32>
      %77 = arith.addf %75, %76 : vector<1x128xf32>
      %c0_42 = arith.constant 0 : index
      %c0_43 = arith.constant 0 : index
      %78 = vector.load %arg8[%c0_42, %c0_43] : memref<1x128xf32, #tpu.memory_space<vmem>>, vector<1x128xf32>
      tpu.vector_store %arg8[%c0_42, %c0_43], %77 {strides = array<i32>} : memref<1x128xf32, #tpu.memory_space<vmem>>, vector<1x128xf32>,
    } else {
    }
    %c0_i32_29 = arith.constant 0 : i32
    %58 = arith.cmpi eq, %arg1, %c0_i32_29 : i32
    %59 = arith.extui %58 : i1 to i32
    %c0_i32_30 = arith.constant 0 : i32
    %60 = arith.cmpi ne, %59, %c0_i32_30 : i32
    scf.if %60 {
      %c0_34 = arith.constant 0 : index
      %c0_35 = arith.constant 0 : index
      %66 = vector.load %arg5[%c0_34, %c0_35] : memref<8x8xf32, #tpu.memory_space<vmem>>, vector<8x8xf32>
      %c0_36 = arith.constant 0 : index
      %c0_37 = arith.constant 0 : index
      %67 = vector.load %arg6[%c0_36, %c0_37] : memref<8x8xf32, #tpu.memory_space<vmem>>, vector<8x8xf32>
      %68 = arith.mulf %66, %67 : vector<8x8xf32>
      %69 = vector.shape_cast %68 : vector<8x8xf32> to vector<1x8x8xf32>
      %cst_38 = arith.constant dense<0.000000e+00> : vector<1xf32>
      %70 = vector.multi_reduction <add>, %69, %cst_38 [1, 2] : vector<1x8x8xf32> to vector<1xf32>
      %71 = vector.shape_cast %70 : vector<1xf32> to vector<1x1x1xf32>
      %72 = vector.extract %71[0, 0, 0] : f32 from vector<1x1x1xf32>
      %cst_39 = arith.constant 0.000000e+00 : f32
      %73 = vector.broadcast %cst_39 : f32 to vector<1x8x128xf32>
      %cst_40 = arith.constant 3.906250e-06 : f32
      %74 = arith.mulf %cst_40, %72 : f32
      %75 = vector.broadcast %74 : f32 to vector<1x8x128xf32>
      %76 = arith.addf %73, %75 : vector<1x8x128xf32>
      %c0_41 = arith.constant 0 : index
      %c0_42 = arith.constant 0 : index
      %c0_43 = arith.constant 0 : index
      %77 = vector.load %arg4[%c0_41, %c0_42, %c0_43] : memref<1x8x128xf32, #tpu.memory_space<vmem>>, vector<1x8x128xf32>
      tpu.vector_store %arg4[%c0_41, %c0_42, %c0_43], %76 {strides = array<i32>} : memref<1x8x128xf32, #tpu.memory_space<vmem>>, vector<1x8x128xf32>,
    } else {
    }
    %c0_i32_31 = arith.constant 0 : i32
    %61 = arith.cmpi eq, %arg1, %c0_i32_31 : i32
    %c0_i32_32 = arith.constant 0 : i32
    %62 = arith.cmpi eq, %arg0, %c0_i32_32 : i32
    %63 = arith.andi %61, %62 : i1
    %64 = arith.extui %63 : i1 to i32
    %c0_i32_33 = arith.constant 0 : i32
    %65 = arith.cmpi ne, %64, %c0_i32_33 : i32
    scf.if %65 {
      %c0_34 = arith.constant 0 : index
      %c0_35 = arith.constant 0 : index
      %c0_36 = arith.constant 0 : index
      %66 = vector.load %arg4[%c0_34, %c0_35, %c0_36] : memref<1x8x128xf32, #tpu.memory_space<vmem>>, vector<1x8x128xf32>
      %c0_37 = arith.constant 0 : index
      %c0_38 = arith.constant 0 : index
      %67 = vector.load %arg7[%c0_37, %c0_38] : memref<1x128xf32, #tpu.memory_space<vmem>>, vector<1x128xf32>
      %68 = vector.shape_cast %67 : vector<1x128xf32> to vector<1x1x128xf32>
      %cst_39 = arith.constant dense<0.000000e+00> : vector<1xf32>
      %69 = vector.multi_reduction <add>, %68, %cst_39 [1, 2] : vector<1x1x128xf32> to vector<1xf32>
      %70 = vector.shape_cast %69 : vector<1xf32> to vector<1x1x1xf32>
      %71 = vector.extract %70[0, 0, 0] : f32 from vector<1x1x1xf32>
      %c0_40 = arith.constant 0 : index
      %c0_41 = arith.constant 0 : index
      %72 = vector.load %arg8[%c0_40, %c0_41] : memref<1x128xf32, #tpu.memory_space<vmem>>, vector<1x128xf32>
      %73 = vector.shape_cast %72 : vector<1x128xf32> to vector<1x1x128xf32>
      %cst_42 = arith.constant dense<0.000000e+00> : vector<1xf32>
      %74 = vector.multi_reduction <add>, %73, %cst_42 [1, 2] : vector<1x1x128xf32> to vector<1xf32>
      %75 = vector.shape_cast %74 : vector<1xf32> to vector<1x1x1xf32>
      %76 = vector.extract %75[0, 0, 0] : f32 from vector<1x1x1xf32>
      %cst_43 = arith.constant 3.906250e-06 : f32
      %77 = arith.mulf %cst_43, %76 : f32
      %78 = arith.subf %71, %77 : f32
      %79 = vector.broadcast %78 : f32 to vector<1x8x128xf32>
      %80 = arith.addf %66, %79 : vector<1x8x128xf32>
      %c0_44 = arith.constant 0 : index
      %c0_45 = arith.constant 0 : index
      %c0_46 = arith.constant 0 : index
      %81 = vector.load %arg4[%c0_44, %c0_45, %c0_46] : memref<1x8x128xf32, #tpu.memory_space<vmem>>, vector<1x8x128xf32>
      tpu.vector_store %arg4[%c0_44, %c0_45, %c0_46], %80 {strides = array<i32>} : memref<1x8x128xf32, #tpu.memory_space<vmem>>, vector<1x8x128xf32>,
    } else {
    }
    return
  }
  func.func @transform_0(%arg0: i32, %arg1: i32) -> (i32, i32) {
    %c0_i32 = arith.constant 0 : i32
    %c0_i32_0 = arith.constant 0 : i32
    return %c0_i32, %arg1 : i32, i32
  }
  func.func @transform_1(%arg0: i32, %arg1: i32) -> (i32, i32) {
    %c0_i32 = arith.constant 0 : i32
    %c0_i32_0 = arith.constant 0 : i32
    return %c0_i32, %arg1 : i32, i32
  }
  func.func @transform_2(%arg0: i32, %arg1: i32) -> (i32, i32, i32) {
    %c0_i32 = arith.constant 0 : i32
    %c0_i32_0 = arith.constant 0 : i32
    %c0_i32_1 = arith.constant 0 : i32
    return %arg0, %c0_i32, %c0_i32_0 : i32, i32, i32
  }
}

</mosaic_0001>

<llo_original>
// kernel: tpu_custom_call.1
$region0: #{tpu_custom_call.1}
  #allocation0 [shape = 'u32[]', space=smem, size = 0x4, offset = 0x4, fixed_abs, tag = 'smem constant byte address 0x4 - core index']
  #allocation1 [shape = 'u32[144,128]{1,0:T(1,128)}', space=vmem, size = 0x12000, scoped, tag = 'internal scratch']
  #allocation2 [shape = 'f32[8,8]{1,0:T(8,128)}', space=vmem, size = 0x1000, scoped, tag = 'scratch operand']
  #allocation3 [shape = 'f32[8,8]{1,0:T(8,128)}', space=vmem, size = 0x1000, scoped, tag = 'scratch operand']
  #allocation4 [shape = 'f32[1,128]{1,0:T(1,128)}', space=vmem, size = 0x200, scoped, tag = 'scratch operand']
  #allocation5 [shape = 'f32[1,128]{1,0:T(1,128)}', space=vmem, size = 0x200, scoped, tag = 'scratch operand']
  %s0 = inlined_call_operand.hbm [shape: f32[8,128], index: 0, kind: input, shape index: {}]
  %s1 = inlined_call_operand.hbm [shape: f32[8,128], index: 1, kind: input, shape index: {}]
  %s2 = inlined_call_operand.hbm [shape: f32[1,8,128], index: 2, kind: output, shape index: {}]
  %s3 = sld [smem:[#allocation0]]
  $region42: #{tpu_custom_call.1} parent=0
    _
  %s5 = ssub.s32 1, %s3
  %s6 = scalar_select 0, %s5, %s3
  $region1: #{tpu_custom_call.1} parent=0
    #allocation6 [shape = 'u8[4096]{0}', space=vmem, size = 0x1000, scoped, tag = 'input window, operand 0, single buffered']
    #allocation7 [shape = 's32[1]{0}', space=sflag, size = 0x4, scoped, tag = 'scoped memory for tpu_custom_call.1']
    #allocation8 [shape = 's32[1]{0}', space=sflag, size = 0x4, scoped, tag = 'scoped memory for tpu_custom_call.1']
    #allocation9 [shape = 'u8[4096]{0}', space=vmem, size = 0x1000, scoped, tag = 'input window, operand 1, single buffered']
    #allocation10 [shape = 's32[1]{0}', space=sflag, size = 0x4, scoped, tag = 'scoped memory for tpu_custom_call.1']
    #allocation11 [shape = 'u8[4096]{0}', space=vmem, size = 0x1000, scoped, tag = 'output window, operand 0, single buffered']
    %7 = vsyncpa [#allocation7], 0
    %8 = vsyncpa [#allocation10], 0
    %9 = vsyncpa [#allocation8], 0
    // Predicated region
    $region2: #{tpu_custom_call.1} parent=1 // pred_check
      _
    $region3: #{tpu_custom_call.1} parent=1 // pred_check_branch
      %11 = sbr.rel (0) target = $region5
    $region4: #{tpu_custom_call.1} parent=1 // pred_region
      %s13 = ssub.s32 128, 128
      %14 = vsyncadd [#allocation7], %s13
      %s16 = sshll.u32 [#allocation6], 4
      %s17 = int_to_ptr.vmem [resolvable:$true] %s16
      %19 = dma.hbm_to_vmem [thread:$0]  %s0, 128, %s17, [#allocation7]
    $region5: #{tpu_custom_call.1} parent=1 // pred_fallthru
      _
    // Predicated region
    $region6: #{tpu_custom_call.1} parent=1 // pred_check
      _
    $region7: #{tpu_custom_call.1} parent=1 // pred_check_branch
      %21 = sbr.rel (0) target = $region9
    $region8: #{tpu_custom_call.1} parent=1 // pred_region
      %s23 = ssub.s32 128, 128
      %24 = vsyncadd [#allocation10], %s23
      %s26 = sshll.u32 [#allocation9], 4
      %s27 = int_to_ptr.vmem [resolvable:$true] %s26
      %29 = dma.hbm_to_vmem [thread:$0]  %s1, 128, %s27, [#allocation10]
    $region9: #{tpu_custom_call.1} parent=1 // pred_fallthru
      _
    // Predicated region
    $region10: #{tpu_custom_call.1} parent=1 // pred_check
      _
    $region11: #{tpu_custom_call.1} parent=1 // pred_check_branch
      %31 = sbr.rel (0) target = $region13
    $region12: #{tpu_custom_call.1} parent=1 // pred_region
      %32 = dma.done [#allocation7], 128
    $region13: #{tpu_custom_call.1} parent=1 // pred_fallthru
      _
    // Predicated region
    $region14: #{tpu_custom_call.1} parent=1 // pred_check
      _
    $region15: #{tpu_custom_call.1} parent=1 // pred_check_branch
      %34 = sbr.rel (0) target = $region17
    $region16: #{tpu_custom_call.1} parent=1 // pred_region
      %35 = dma.done [#allocation10], 128
    $region17: #{tpu_custom_call.1} parent=1 // pred_fallthru
      _
    %p37 = scmp.eq.s32.totalorder 0, 0
    // Predicated region
    $region18: #{tpu_custom_call.1} parent=1 // pred_check
      %p38 = pneg %p37
    $region19: #{tpu_custom_call.1} parent=1 // pred_check_branch
      %40 = sbr.rel (%p38) target = $region21
    $region20: #{tpu_custom_call.1} parent=1 // pred_region
      %vm41 = vcmask 64512
      %42 = vst.msk [vmem:[#allocation2] sm:$0xff] %vm41, 0.0
      %43 = vst.msk [vmem:[#allocation3] sm:$0xff] %vm41, 0.0
      %44 = vst [vmem:[#allocation4] sm:$0x1] 0.0
      %45 = vst [vmem:[#allocation5] sm:$0x1] 0.0
    $region21: #{tpu_custom_call.1} parent=1 // pred_fallthru
      _
    %v46 = vld [vmem:[#allocation6] sm:$0xff]
    %v47 = vld [vmem:[#allocation9] sm:$0xff]
    %v48 = vrot.slane %v46, 4
    %v49 = vadd.f32 %v46, %v48
    %v50 = vrot.slane %v49, 2
    %v51 = vadd.f32 %v49, %v50
    %v52 = vrot.slane %v51, 1
    %v53 = vadd.f32 %v51, %v52
    %v54 = vrcp.pop 8.0
    %v55 = vmul.f32 %v53, %v54
    %v56 = vrot.slane %v47, 4
    %v57 = vadd.f32 %v47, %v56
    %v58 = vrot.slane %v57, 2
    %v59 = vadd.f32 %v57, %v58
    %v60 = vrot.slane %v59, 1
    %v61 = vadd.f32 %v59, %v60
    %v62 = vmul.f32 %v61, %v54
    %v63 = vsub.f32 %v46, %v55
    %v64 = vsub.f32 %v47, %v62
    %v65 = vmul.f32 %v63, %v63
    %v66 = vrot.slane %v65, 4
    %v67 = vadd.f32 %v65, %v66
    %v68 = vrot.slane %v67, 2
    %v69 = vadd.f32 %v67, %v68
    %v70 = vrot.slane %v69, 1
    %v71 = vadd.f32 %v69, %v70
    %v72 = vmul.f32 %v71, 0.14285715
    %v73 = vmul.f32 %v64, %v64
    %v74 = vrot.slane %v73, 4
    %v75 = vadd.f32 %v73, %v74
    %v76 = vrot.slane %v75, 2
    %v77 = vadd.f32 %v75, %v76
    %v78 = vrot.slane %v77, 1
    %v79 = vadd.f32 %v77, %v78
    %v80 = vmul.f32 %v79, 0.14285715
    %vm81 = vcmp.gt.f32.partialorder %v72, 0.0
    %v82 = vrsqrt.pop %v72
    %v83 = vsel %vm81, %v82, 0.0
    %v84 = vmul.f32 %v83, 0.35355338
    %vm85 = vcmp.gt.f32.partialorder %v80, 0.0
    %v86 = vrsqrt.pop %v80
    %v87 = vsel %vm85, %v86, 0.0
    %v88 = vmul.f32 %v87, 0.35355338
    %v89 = vmul.f32 %v63, %v84
    %v90 = vmul.f32 %v64, %v88
    %v91 = vpack.c.bf16 %v89, %v89
    %v92 = vpack.c.bf16 %v90, %v90
    %v93 = vld [vmem:[#allocation2] sm:$0xff]
    %94 = vmatprep.subr.bf16.mxu0 0
    %95 = vmatpush1.bf16.xpose.msra.mxu0 %v91
    %96 = vmatprep.subr.bf16.mxu0 0
    %97 = vmatpush1.bf16.xpose.msra.mxu0 0
    %98 = vmatprep.subr.bf16.mxu0 0
    %99 = vmatpush1.bf16.xpose.msra.mxu0 0
    %100 = vmatprep.subr.bf16.mxu0 0
    %101 = vmatpush1.bf16.xpose.msra.mxu0 0
    %102 = vmatprep.subr.bf16.mxu0 0
    %103 = vmatpush1.bf16.xpose.msra.mxu0 0
    %104 = vmatprep.subr.bf16.mxu0 0
    %105 = vmatpush1.bf16.xpose.msra.mxu0 0
    %106 = vmatprep.subr.bf16.mxu0 0
    %107 = vmatpush1.bf16.xpose.msra.mxu0 0
    %108 = vmatprep.subr.bf16.mxu0 0
    %109 = vmatpush1.bf16.xpose.msra.mxu0 0
    %110 = vmatprep.subr.bf16.mxu0 0
    %111 = vmatpush1.bf16.xpose.msra.mxu0 0
    %112 = vmatprep.subr.bf16.mxu0 0
    %113 = vmatpush1.bf16.xpose.msra.mxu0 0
    %114 = vmatprep.subr.bf16.mxu0 0
    %115 = vmatpush1.bf16.xpose.msra.mxu0 0
    %116 = vmatprep.subr.bf16.mxu0 0
    %117 = vmatpush1.bf16.xpose.msra.mxu0 0
    %118 = vmatprep.subr.bf16.mxu0 0
    %119 = vmatpush1.bf16.xpose.msra.mxu0 0
    %120 = vmatprep.subr.bf16.mxu0 0
    %121 = vmatpush1.bf16.xpose.msra.mxu0 0
    %122 = vmatprep.subr.bf16.mxu0 0
    %123 = vmatpush1.bf16.xpose.msra.mxu0 0
    %124 = vmatprep.subr.bf16.mxu0 0
    %125 = vmatpush1.bf16.xpose.msra.mxu0 0
    %126 = vmatprep.mubr.bf16.mxu0 0
    %127 = vmatmul.mubr.bf16.gmra.mrb[0].mxu0 %v91
    %v128 = vpop.f32.mrb[0].mxu0
    %v129 = vadd.f32 0.0, %v128
    %v130 = vpop.f32.mrb[0].mxu0
    %v131 = vpop.f32.mrb[0].mxu0
    %v132 = vpop.f32.mrb[0].mxu0
    %133 = vdwg.mxu0
    %v134 = vadd.f32 %v93, %v129
    %vm135 = vcmask 64512
    %136 = vst.msk [vmem:[#allocation2] sm:$0xff] %vm135, %v134
    %v137 = vld [vmem:[#allocation3] sm:$0xff]
    %138 = vmatprep.subr.bf16.mxu0 0
    %139 = vmatpush1.bf16.xpose.msra.mxu0 %v92
    %140 = vmatprep.subr.bf16.mxu0 0
    %141 = vmatpush1.bf16.xpose.msra.mxu0 0
    %142 = vmatprep.subr.bf16.mxu0 0
    %143 = vmatpush1.bf16.xpose.msra.mxu0 0
    %144 = vmatprep.subr.bf16.mxu0 0
    %145 = vmatpush1.bf16.xpose.msra.mxu0 0
    %146 = vmatprep.subr.bf16.mxu0 0
    %147 = vmatpush1.bf16.xpose.msra.mxu0 0
    %148 = vmatprep.subr.bf16.mxu0 0
    %149 = vmatpush1.bf16.xpose.msra.mxu0 0
    %150 = vmatprep.subr.bf16.mxu0 0
    %151 = vmatpush1.bf16.xpose.msra.mxu0 0
    %152 = vmatprep.subr.bf16.mxu0 0
    %153 = vmatpush1.bf16.xpose.msra.mxu0 0
    %154 = vmatprep.subr.bf16.mxu0 0
    %155 = vmatpush1.bf16.xpose.msra.mxu0 0
    %156 = vmatprep.subr.bf16.mxu0 0
    %157 = vmatpush1.bf16.xpose.msra.mxu0 0
    %158 = vmatprep.subr.bf16.mxu0 0
    %159 = vmatpush1.bf16.xpose.msra.mxu0 0
    %160 = vmatprep.subr.bf16.mxu0 0
    %161 = vmatpush1.bf16.xpose.msra.mxu0 0
    %162 = vmatprep.subr.bf16.mxu0 0
    %163 = vmatpush1.bf16.xpose.msra.mxu0 0
    %164 = vmatprep.subr.bf16.mxu0 0
    %165 = vmatpush1.bf16.xpose.msra.mxu0 0
    %166 = vmatprep.subr.bf16.mxu0 0
    %167 = vmatpush1.bf16.xpose.msra.mxu0 0
    %168 = vmatprep.subr.bf16.mxu0 0
    %169 = vmatpush1.bf16.xpose.msra.mxu0 0
    %170 = vmatprep.mubr.bf16.mxu0 0
    %171 = vmatmul.mubr.bf16.gmra.mrb[0].mxu0 %v92
    %v172 = vpop.f32.mrb[0].mxu0
    %v173 = vadd.f32 0.0, %v172
    %v174 = vpop.f32.mrb[0].mxu0
    %v175 = vpop.f32.mrb[0].mxu0
    %v176 = vpop.f32.mrb[0].mxu0
    %177 = vdwg.mxu0
    %v178 = vadd.f32 %v137, %v173
    %179 = vst.msk [vmem:[#allocation3] sm:$0xff] %vm135, %v178
    %p180 = scmp.eq.s32.totalorder 0, 0
    // Predicated region
    $region22: #{tpu_custom_call.1} parent=1 // pred_check
      %p181 = pneg %p180
    $region23: #{tpu_custom_call.1} parent=1 // pred_check_branch
      %183 = sbr.rel (%p181) target = $region25
    $region24: #{tpu_custom_call.1} parent=1 // pred_region
      %v184 = vmul.f32 %v89, %v90
      %v185 = vrot.slane %v184, 4
      %v186 = vadd.f32 %v184, %v185
      %v187 = vrot.slane %v186, 2
      %v188 = vadd.f32 %v186, %v187
      %v189 = vrot.slane %v188, 1
      %v190 = vadd.f32 %v188, %v189
      %v191 = vld [vmem:[#allocation4] sm:$0x1]
      %v192 = vsub.f32 %v190, 1.0
      %v193 = vmul.f32 %v192, %v192
      %v194 = vadd.f32 %v191, %v193
      %195 = vst [vmem:[#allocation4] sm:$0x1] %v194
      %v196 = vld [vmem:[#allocation5] sm:$0x1]
      %v197 = vmul.f32 %v190, %v190
      %v198 = vadd.f32 %v196, %v197
      %199 = vst [vmem:[#allocation5] sm:$0x1] %v198
    $region25: #{tpu_custom_call.1} parent=1 // pred_fallthru
      _
    // Predicated region
    $region26: #{tpu_custom_call.1} parent=1 // pred_check
      %p200 = pneg %p37
    $region27: #{tpu_custom_call.1} parent=1 // pred_check_branch
      %202 = sbr.rel (%p200) target = $region29
    $region28: #{tpu_custom_call.1} parent=1 // pred_region
      %v203 = vld [vmem:[#allocation2] sm:$0xff]
      %v204 = vld [vmem:[#allocation3] sm:$0xff]
      %v205 = vmul.f32 %v203, %v204
      %v206 = vsel %vm135, %v205, 0.0
      %207 = vadd.xlane.f32.xlu0 %v206
      %v208 = vpop.xlane.xlu0 %207
      %v209 = vrot.slane %v208, 4
      %v210 = vadd.f32 %v208, %v209
      %v211 = vrot.slane %v210, 2
      %v212 = vadd.f32 %v210, %v211
      %v213 = vrot.slane %v212, 1
      %v214 = vadd.f32 %v212, %v213
      %s215 = vtos %v214
      %s216 = smul.f32 %s215, 3.90625e-06
      %v217 = vstv %s216
      %v218 = vadd.f32 %v217, 0.0
      %219 = vst [vmem:[#allocation11] sm:$0xff] %v218
    $region29: #{tpu_custom_call.1} parent=1 // pred_fallthru
      _
    %p220 = pnand %p37, %p180
    %p221 = pneg %p220
    // Predicated region
    $region30: #{tpu_custom_call.1} parent=1 // pred_check
      _
    $region31: #{tpu_custom_call.1} parent=1 // pred_check_branch
      %223 = sbr.rel (%p220) target = $region33
    $region32: #{tpu_custom_call.1} parent=1 // pred_region
      %v224 = vld [vmem:[#allocation11] sm:$0xff]
      %v225 = vld [vmem:[#allocation4] sm:$0x1]
      %vm226 = vcmask 1040384
      %v227 = vsel %vm226, %v225, 0.0
      %228 = vadd.xlane.f32.xlu0 %v227
      %v229 = vpop.xlane.xlu0 %228
      %v230 = vrot.slane %v229, 4
      %v231 = vadd.f32 %v229, %v230
      %v232 = vrot.slane %v231, 2
      %v233 = vadd.f32 %v231, %v232
      %v234 = vrot.slane %v233, 1
      %v235 = vadd.f32 %v233, %v234
      %s236 = vtos %v235
      %v237 = vld [vmem:[#allocation5] sm:$0x1]
      %v238 = vsel %vm226, %v237, 0.0
      %239 = vadd.xlane.f32.xlu0 %v238
      %v240 = vpop.xlane.xlu0 %239
      %v241 = vrot.slane %v240, 4
      %v242 = vadd.f32 %v240, %v241
      %v243 = vrot.slane %v242, 2
      %v244 = vadd.f32 %v242, %v243
      %v245 = vrot.slane %v244, 1
      %v246 = vadd.f32 %v244, %v245
      %s247 = vtos %v246
      %s248 = smul.f32 %s247, 3.90625e-06
      %s249 = ssub.f32 %s236, %s248
      %v250 = vstv %s249
      %v251 = vadd.f32 %v224, %v250
      %252 = vst [vmem:[#allocation11] sm:$0xff] %v251
    $region33: #{tpu_custom_call.1} parent=1 // pred_fallthru
      _
    // Predicated region
    $region34: #{tpu_custom_call.1} parent=1 // pred_check
      _
    $region35: #{tpu_custom_call.1} parent=1 // pred_check_branch
      %254 = sbr.rel (0) target = $region37
    $region36: #{tpu_custom_call.1} parent=1 // pred_region
      %s256 = ssub.s32 128, 128
      %257 = vsyncadd [#allocation8], %s256
      %s259 = sshll.u32 [#allocation11], 4
      %s260 = int_to_ptr.vmem [resolvable:$true] %s259
      %262 = dma.vmem_to_hbm [thread:$0]  %s260, 128, %s2, [#allocation8]
    $region37: #{tpu_custom_call.1} parent=1 // pred_fallthru
      _
    // Predicated region
    $region38: #{tpu_custom_call.1} parent=1 // pred_check
      _
    $region39: #{tpu_custom_call.1} parent=1 // pred_check_branch
      %264 = sbr.rel (0) target = $region41
    $region40: #{tpu_custom_call.1} parent=1 // pred_region
      %265 = dma.done [#allocation8], 128
    $region41: #{tpu_custom_call.1} parent=1 // pred_fallthru
      _
    %266 = vsyncpa [#allocation7], 1
    %267 = vsyncpa [#allocation10], 1
    %268 = vsyncpa [#allocation8], 1

</llo_original>
